<compile_context>
chip_gen: v7x
topology: tpu7x:2x2x1
jax: 0.10.0
libtpu: 0.0.40
codegen_flags: <defaults>
</compile_context>

<pallas_src>
import functools

import jax
import jax.numpy as jnp
import numpy as np
from jax.experimental import pallas as pl
from jax.experimental.pallas import tpu as pltpu


def _round_up(x: int, m: int) -> int:
    return (x + m - 1) // m * m


def _aggregator_kernel(*refs, reduce: str, n_rows: int, block_n: int,
                       block_s: int, mask_rows: bool):
    """Grid step (sj, j, i): accumulate row-block i into the resident (TS, TF) accumulator."""
    if reduce == "mean":
        idx_ref, x_ref, inv_ref, out_ref, acc_ref = refs
    else:
        idx_ref, x_ref, out_ref, acc_ref = refs
        inv_ref = None

    sj = pl.program_id(0)            # segment-tile axis ("parallel")
    i = pl.program_id(2)             # row / reduction axis ("arbitrary", last)

    @pl.when(i == 0)
    def _init():
        acc_ref[...] = jnp.zeros_like(acc_ref)

    idx = idx_ref[...]                                   # (1, TN) int32, -1 in padded lanes
    bs = acc_ref.shape[0]
    tn = idx.shape[1]
    # One-hot built directly in (TS, TN) orientation; -1 sentinel never matches.
    seg = jax.lax.broadcasted_iota(jnp.int32, (bs, tn), 0) + sj * block_s
    onehot = (seg == idx).astype(x_ref.dtype)            # 0/1 exactly representable

    def _accum(x_blk):
        # f32 accumulate in VMEM scratch (MXU-native), cast once at finalize.
        acc_ref[...] += jnp.dot(onehot, x_blk, preferred_element_type=jnp.float32)

    if mask_rows:
        # Two-path: only the single ragged tail block pays the VPU select.
        last = pl.num_programs(2) - 1

        @pl.when(i < last)
        def _interior():
            _accum(x_ref[...])

        @pl.when(i == last)
        def _tail():
            xb = x_ref[...]
            row = jax.lax.broadcasted_iota(jnp.int32, (xb.shape[0], 1), 0) + i * block_n
            _accum(jnp.where(row < n_rows, xb, jnp.zeros_like(xb)))
    else:
        _accum(x_ref[...])

    @pl.when(i == pl.num_programs(2) - 1)
    def _finalize():
        if reduce == "mean":
            # Precomputed (TS, 1) inverse counts: broadcast multiply, no full-tile divide.
            out_ref[...] = (acc_ref[...] * inv_ref[...]).astype(out_ref.dtype)
        else:
            out_ref[...] = acc_ref[...].astype(out_ref.dtype)


def _select_tiles(n, f, s, x_itemsize, out_itemsize, is_mean, vmem_cap):
    """Pick (block_n, block_f, block_s) from an explicit VMEM footprint model."""
    sub = max(8, 32 // x_itemsize)                       # sublane granule: f32->8, bf16->16
    base_bn = 2048 if x_itemsize <= 2 else 1024          # deep MXU contraction, amortize step cost
    block_n = _round_up(n, sub) if n <= base_bn else base_bn

    budget = int(vmem_cap * 0.55)                        # leave headroom for compiler internals
    oh_item = max(x_itemsize, 2)

    def footprint(bs, bf, bn):
        acc = bs * bf * 4                                # resident f32 accumulator
        outb = 2 * bs * bf * out_itemsize                # double-buffered output block
        xbuf = 2 * bn * bf * x_itemsize                  # double-buffered x blocks
        idxb = 2 * 8 * bn * 4                            # idx blocks (sublane-padded)
        oneh = bs * bn * oh_item                         # materialized one-hot intermediate
        invb = 2 * bs * 128 * 4 if is_mean else 0        # (TS,1) inv counts (lane-padded)
        return acc + outb + xbuf + idxb + oneh + invb

    # Feature-tile candidates: full width unless VMEM forces tiling (128-aligned divisors).
    f_cands = ([c for c in range(f, 0, -128) if f % c == 0] if f % 128 == 0 else [f])

    # Prefer full-S residency (no x re-streaming); shrink block_f first.
    for bf in f_cands:
        if footprint(s, bf, block_n) <= budget:
            return block_n, bf, s, footprint(s, bf, block_n)

    # Still too big: smallest feature tile, shrink block_n if needed, then tile S
    # (caps the resident accumulator -- important for v7x's 64 MiB VMEM).
    bf = f_cands[-1]
    bn = block_n
    while footprint(8, bf, bn) > budget and bn % 256 == 0 and bn > 256:
        bn //= 2
    per_s = bf * 4 + 2 * bf * out_itemsize + bn * oh_item + (2 * 128 * 4 if is_mean else 0)
    fixed = 2 * bn * bf * x_itemsize + 2 * 8 * bn * 4
    bs = max(per_s * 8, budget - fixed) // per_s
    bs = max(8, (bs // 8) * 8)
    if bs >= s:
        bs = s
    return bn, bf, bs, footprint(bs, bf, bn)


def aggregator_forward(x, idx, dim: int, dim_size: int, *,
                       reduce: str = "sum", phm_dim: int = 4):
    """JAX/Pallas equivalent of Aggregator(reduce=reduce, phm_dim=phm_dim)(x, idx, dim, dim_size).

    Note: indices outside [0, dim_size) are silently dropped (torch_scatter would error /
    write out of range) -- callers must guarantee 0 <= idx < dim_size.
    """
    assert reduce in ("sum", "min", "max", "mean")
    if reduce in ("min", "max"):
        # TODO(synk): min/max scatter reductions need a masked-compare path (no clean MXU form).
        raise NotImplementedError("Only 'sum' and 'mean' are implemented in the Pallas kernel.")
    assert dim == 0, "Aggregator is used with dim=0 (scatter over the node axis)."
    assert x.ndim == 2 and idx.ndim == 1 and x.shape[0] == idx.shape[0]

    n, f = x.shape
    s = int(dim_size)
    x_itemsize = jnp.dtype(x.dtype).itemsize

    try:
        vmem_cap = int(pltpu.get_tpu_info().vmem_capacity_bytes)
    except Exception:
        vmem_cap = 64 << 20                              # conservative fallback (v7x per-core)

    block_n, block_f, block_s, fp = _select_tiles(
        n, f, s, x_itemsize, x_itemsize, reduce == "mean", vmem_cap)

    n_pad = _round_up(n, block_n)
    mask_rows = (n_pad != n)
    grid_n = n_pad // block_n
    grid_f = f // block_f
    grid_s = pl.cdiv(s, block_s)
    s_pad = grid_s * block_s

    # Only idx gets a (tiny) padded copy; x is passed through untouched.
    idx_p = jnp.full((1, n_pad), -1, jnp.int32).at[0, :n].set(idx.astype(jnp.int32))

    in_specs = [
        pl.BlockSpec((1, block_n), lambda sj, j, i: (0, i)),         # idx (lane-dense)
        pl.BlockSpec((block_n, block_f), lambda sj, j, i: (i, j)),   # x block
    ]
    inputs = [idx_p, x]

    if reduce == "mean":
        # Precompute inverse counts in the wrapper (tiny XLA scatter); passed as (S,1).
        idx32 = idx.astype(jnp.int32)
        valid = (idx32 >= 0) & (idx32 < s)
        counts = jnp.zeros((s_pad,), jnp.float32).at[jnp.where(valid, idx32, 0)].add(
            valid.astype(jnp.float32))
        inv = (1.0 / jnp.maximum(counts, 1.0)).reshape(s_pad, 1)     # empty segments -> 0 sum
        in_specs.append(pl.BlockSpec((block_s, 1), lambda sj, j, i: (sj, 0)))
        inputs.append(inv)

    kernel = functools.partial(_aggregator_kernel, reduce=reduce, n_rows=n,
                               block_n=block_n, block_s=block_s, mask_rows=mask_rows)

    # Raise the scoped-VMEM limit only when the footprint actually needs it.
    vmem_limit = None
    if fp * 1.4 > (16 << 20):
        vmem_limit = int(min(vmem_cap * 0.9, fp * 1.6 + (8 << 20)))

    out = pl.pallas_call(
        kernel,
        out_shape=jax.ShapeDtypeStruct((s, f), x.dtype),
        grid_spec=pltpu.PrefetchScalarGridSpec(
            num_scalar_prefetch=0,
            grid=(grid_s, grid_f, grid_n),               # reduction (row) axis last
            in_specs=in_specs,
            out_specs=pl.BlockSpec((block_s, block_f), lambda sj, j, i: (sj, j)),
            scratch_shapes=[pltpu.VMEM((block_s, block_f), jnp.float32)],
        ),
        compiler_params=pltpu.CompilerParams(
            dimension_semantics=("parallel", "parallel", "arbitrary"),
            vmem_limit_bytes=vmem_limit,
        ),
    )(*inputs)

    return out


if __name__ == "__main__":
    key = jax.random.PRNGKey(0)
    k_x, k_idx = jax.random.split(key)

    phm_dim = 4
    feats = 8
    num_nodes = 10          # batch_num_nodes
    dim_size = 5            # number of segments (e.g. graphs in the batch)

    x = jax.random.normal(k_x, (num_nodes, phm_dim * feats), dtype=jnp.float32)
    idx = jax.random.randint(k_idx, (num_nodes,), 0, dim_size, dtype=jnp.int32)

    # Aggregator(reduce='sum', phm_dim=4).forward(x, idx, dim=0, dim_size=5)
    out_sum = aggregator_forward(x, idx, dim=0, dim_size=dim_size,
                                 reduce="sum", phm_dim=phm_dim)
    out_mean = aggregator_forward(x, idx, dim=0, dim_size=dim_size,
                                  reduce="mean", phm_dim=phm_dim)
    jax.block_until_ready(out_sum)
    jax.block_until_ready(out_mean)

    # Pure-JAX reference (torch_scatter semantics: empty segments -> 0).
    ref_sum = jnp.zeros((dim_size, x.shape[1]), x.dtype).at[idx].add(x)
    counts = jnp.zeros((dim_size,), jnp.float32).at[idx].add(1.0)
    ref_mean = ref_sum / jnp.maximum(counts, 1.0)[:, None]

    np.testing.assert_allclose(np.asarray(out_sum), np.asarray(ref_sum), rtol=1e-5, atol=1e-5)
    np.testing.assert_allclose(np.asarray(out_mean), np.asarray(ref_mean), rtol=1e-5, atol=1e-5)

    print("KERNEL_OK")
</pallas_src>

<mosaic_0001>
module attributes {stable_mosaic.version = 11 : i64} {
  func.func @_aggregator_kernel(%arg0: i32, %arg1: i32, %arg2: i32, %arg3: memref<1x16xi32, #tpu.memory_space<vmem>>, %arg4: memref<16x32xf32, #tpu.memory_space<vmem>>, %arg5: memref<5x32xf32, #tpu.memory_space<vmem>>, %arg6: memref<5x32xf32, #tpu.memory_space<vmem>>) attributes {dimension_semantics = [#tpu.dimension_semantics<parallel>, #tpu.dimension_semantics<parallel>, #tpu.dimension_semantics<arbitrary>], iteration_bounds = array<i64: 1, 1, 1>, scalar_prefetch = 0 : i64, scratch_operands = 1 : i64, tpu.core_type = #tpu.core_type<tc>, window_params = [{transform_indices = @transform_0, window_bounds = array<i64: 1, 16>}, {transform_indices = @transform_1, window_bounds = array<i64: 16, 32>}, {transform_indices = @transform_2, window_bounds = array<i64: 5, 32>}]} {
    %c0_i32 = arith.constant 0 : i32
    %0 = arith.cmpi eq, %arg2, %c0_i32 : i32
    %1 = arith.extui %0 : i1 to i32
    %c0_i32_0 = arith.constant 0 : i32
    %2 = arith.cmpi ne, %1, %c0_i32_0 : i32
    scf.if %2 {
      %cst = arith.constant 0.000000e+00 : f32
      %21 = vector.broadcast %cst : f32 to vector<5x32xf32>
      %c0_8 = arith.constant 0 : index
      %c0_9 = arith.constant 0 : index
      %22 = vector.load %arg6[%c0_8, %c0_9] : memref<5x32xf32, #tpu.memory_space<vmem>>, vector<5x32xf32>
      tpu.vector_store %arg6[%c0_8, %c0_9], %21 {strides = array<i32>} : memref<5x32xf32, #tpu.memory_space<vmem>>, vector<5x32xf32>,
    } else {
    }
    %c0 = arith.constant 0 : index
    %c0_1 = arith.constant 0 : index
    %3 = vector.load %arg3[%c0, %c0_1] : memref<1x16xi32, #tpu.memory_space<vmem>>, vector<1x16xi32>
    %4 = tpu.iota {dimensions = array<i32: 0>} : vector<5x16xi32>
    %c5_i32 = arith.constant 5 : i32
    %5 = arith.muli %arg0, %c5_i32 : i32
    %6 = vector.broadcast %5 : i32 to vector<5x16xi32>
    %7 = arith.addi %4, %6 : vector<5x16xi32>
    %8 = vector.broadcast %3 : vector<1x16xi32> to vector<5x16xi32>
    %9 = arith.cmpi eq, %7, %8 : vector<5x16xi32>
    %10 = arith.extui %9 : vector<5x16xi1> to vector<5x16xi32>
    %11 = arith.sitofp %10 : vector<5x16xi32> to vector<5x16xf32>
    %c0_i32_2 = arith.constant 0 : i32
    %12 = arith.cmpi slt, %arg2, %c0_i32_2 : i32
    %13 = arith.extui %12 : i1 to i32
    %c0_i32_3 = arith.constant 0 : i32
    %14 = arith.cmpi ne, %13, %c0_i32_3 : i32
    scf.if %14 {
      %c0_8 = arith.constant 0 : index
      %c0_9 = arith.constant 0 : index
      %21 = vector.load %arg4[%c0_8, %c0_9] : memref<16x32xf32, #tpu.memory_space<vmem>>, vector<16x32xf32>
      %c0_10 = arith.constant 0 : index
      %c0_11 = arith.constant 0 : index
      %22 = vector.load %arg6[%c0_10, %c0_11] : memref<5x32xf32, #tpu.memory_space<vmem>>, vector<5x32xf32>
      %cst = arith.constant dense<0.000000e+00> : vector<5x32xf32>
      %23 = tpu.matmul %11, %21, %cst {dimension_numbers = #tpu.dot_dimension_numbers<[1], [0], [0], [1], [0, 0, 1, 1], [], []>} : vector<5x16xf32>, vector<16x32xf32>, vector<5x32xf32> -> vector<5x32xf32>
      %24 = arith.addf %22, %23 : vector<5x32xf32>
      %c0_12 = arith.constant 0 : index
      %c0_13 = arith.constant 0 : index
      %25 = vector.load %arg6[%c0_12, %c0_13] : memref<5x32xf32, #tpu.memory_space<vmem>>, vector<5x32xf32>
      tpu.vector_store %arg6[%c0_12, %c0_13], %24 {strides = array<i32>} : memref<5x32xf32, #tpu.memory_space<vmem>>, vector<5x32xf32>,
    } else {
    }
    %c0_i32_4 = arith.constant 0 : i32
    %15 = arith.cmpi eq, %arg2, %c0_i32_4 : i32
    %16 = arith.extui %15 : i1 to i32
    %c0_i32_5 = arith.constant 0 : i32
    %17 = arith.cmpi ne, %16, %c0_i32_5 : i32
    scf.if %17 {
      %c0_8 = arith.constant 0 : index
      %c0_9 = arith.constant 0 : index
      %21 = vector.load %arg4[%c0_8, %c0_9] : memref<16x32xf32, #tpu.memory_space<vmem>>, vector<16x32xf32>
      %22 = tpu.iota {dimensions = array<i32: 0>} : vector<16x1xi32>
      %c16_i32 = arith.constant 16 : i32
      %23 = arith.muli %arg2, %c16_i32 : i32
      %24 = vector.broadcast %23 : i32 to vector<16x1xi32>
      %25 = arith.addi %22, %24 : vector<16x1xi32>
      %c10_i32 = arith.constant 10 : i32
      %26 = vector.broadcast %c10_i32 : i32 to vector<16x1xi32>
      %27 = arith.cmpi slt, %25, %26 : vector<16x1xi32>
      %cst = arith.constant 0.000000e+00 : f32
      %28 = vector.broadcast %cst : f32 to vector<16x32xf32>
      %29 = vector.shape_cast %27 : vector<16x1xi1> to vector<16x1xi1>
      %30 = vector.broadcast %29 : vector<16x1xi1> to vector<16x32xi1>
      %31 = arith.select %30, %21, %28 : vector<16x32xi1>, vector<16x32xf32>
      %c0_10 = arith.constant 0 : index
      %c0_11 = arith.constant 0 : index
      %32 = vector.load %arg6[%c0_10, %c0_11] : memref<5x32xf32, #tpu.memory_space<vmem>>, vector<5x32xf32>
      %cst_12 = arith.constant dense<0.000000e+00> : vector<5x32xf32>
      %33 = tpu.matmul %11, %31, %cst_12 {dimension_numbers = #tpu.dot_dimension_numbers<[1], [0], [0], [1], [0, 0, 1, 1], [], []>} : vector<5x16xf32>, vector<16x32xf32>, vector<5x32xf32> -> vector<5x32xf32>
      %34 = arith.addf %32, %33 : vector<5x32xf32>
      %c0_13 = arith.constant 0 : index
      %c0_14 = arith.constant 0 : index
      %35 = vector.load %arg6[%c0_13, %c0_14] : memref<5x32xf32, #tpu.memory_space<vmem>>, vector<5x32xf32>
      tpu.vector_store %arg6[%c0_13, %c0_14], %34 {strides = array<i32>} : memref<5x32xf32, #tpu.memory_space<vmem>>, vector<5x32xf32>,
    } else {
    }
    %c0_i32_6 = arith.constant 0 : i32
    %18 = arith.cmpi eq, %arg2, %c0_i32_6 : i32
    %19 = arith.extui %18 : i1 to i32
    %c0_i32_7 = arith.constant 0 : i32
    %20 = arith.cmpi ne, %19, %c0_i32_7 : i32
    scf.if %20 {
      %c0_8 = arith.constant 0 : index
      %c0_9 = arith.constant 0 : index
      %21 = vector.load %arg6[%c0_8, %c0_9] : memref<5x32xf32, #tpu.memory_space<vmem>>, vector<5x32xf32>
      %c0_10 = arith.constant 0 : index
      %c0_11 = arith.constant 0 : index
      %22 = vector.load %arg5[%c0_10, %c0_11] : memref<5x32xf32, #tpu.memory_space<vmem>>, vector<5x32xf32>
      tpu.vector_store %arg5[%c0_10, %c0_11], %21 {strides = array<i32>} : memref<5x32xf32, #tpu.memory_space<vmem>>, vector<5x32xf32>,
    } else {
    }
    return
  }
  func.func @transform_0(%arg0: i32, %arg1: i32, %arg2: i32) -> (i32, i32) {
    %c0_i32 = arith.constant 0 : i32
    %c0_i32_0 = arith.constant 0 : i32
    return %c0_i32, %arg2 : i32, i32
  }
  func.func @transform_1(%arg0: i32, %arg1: i32, %arg2: i32) -> (i32, i32) {
    %c0_i32 = arith.constant 0 : i32
    return %arg2, %arg1 : i32, i32
  }
  func.func @transform_2(%arg0: i32, %arg1: i32, %arg2: i32) -> (i32, i32) {
    %c0_i32 = arith.constant 0 : i32
    return %arg0, %arg1 : i32, i32
  }
}

</mosaic_0001>

<llo_original>
// kernel: tpu_custom_call.1
$region0: #{tpu_custom_call.1}
  #allocation0 [shape = 'u32[]', space=smem, size = 0x4, offset = 0x4, fixed_abs, tag = 'smem constant byte address 0x4 - core index']
  #allocation1 [shape = 'u32[144,128]{1,0:T(1,128)}', space=vmem, size = 0x12000, scoped, tag = 'internal scratch']
  #allocation2 [shape = 'f32[5,32]{1,0:T(8,128)}', space=vmem, size = 0x1000, scoped, tag = 'scratch operand']
  %s0 = inlined_call_operand.hbm [shape: s32[1,16], index: 0, kind: input, shape index: {}]
  %s1 = inlined_call_operand.hbm [shape: f32[10,32], index: 1, kind: input, shape index: {}]
  %s2 = inlined_call_operand.hbm [shape: f32[5,32], index: 2, kind: output, shape index: {}]
  %s3 = sld [smem:[#allocation0]]
  $region38: #{tpu_custom_call.1} parent=0
    _
  %s5 = ssub.s32 1, %s3
  %s6 = scalar_select 0, %s5, %s3
  $region1: #{tpu_custom_call.1} parent=0
    #allocation3 [shape = 'u8[512]{0}', space=vmem, size = 0x400, scoped, tag = 'input window, operand 0, single buffered']
    #allocation4 [shape = 's32[1]{0}', space=sflag, size = 0x4, scoped, tag = 'scoped memory for tpu_custom_call.1']
    #allocation5 [shape = 's32[1]{0}', space=sflag, size = 0x4, scoped, tag = 'scoped memory for tpu_custom_call.1']
    #allocation6 [shape = 'u8[8192]{0}', space=vmem, size = 0x2000, scoped, tag = 'input window, operand 1, single buffered']
    #allocation7 [shape = 's32[1]{0}', space=sflag, size = 0x4, scoped, tag = 'scoped memory for tpu_custom_call.1']
    #allocation8 [shape = 'u8[4096]{0}', space=vmem, size = 0x1000, scoped, tag = 'output window, operand 0, single buffered']
    %7 = vsyncpa [#allocation4], 0
    %8 = vsyncpa [#allocation7], 0
    %9 = vsyncpa [#allocation5], 0
    // Predicated region
    $region2: #{tpu_custom_call.1} parent=1 // pred_check
      _
    $region3: #{tpu_custom_call.1} parent=1 // pred_check_branch
      %11 = sbr.rel (0) target = $region5
    $region4: #{tpu_custom_call.1} parent=1 // pred_region
      %s13 = ssub.s32 16, 16
      %14 = vsyncadd [#allocation4], %s13
      %s16 = sshll.u32 [#allocation3], 4
      %s17 = int_to_ptr.vmem [resolvable:$true] %s16
      %19 = dma.hbm_to_vmem [thread:$0]  %s0, 16, %s17, [#allocation4]
    $region5: #{tpu_custom_call.1} parent=1 // pred_fallthru
      _
    // Predicated region
    $region6: #{tpu_custom_call.1} parent=1 // pred_check
      _
    $region7: #{tpu_custom_call.1} parent=1 // pred_check_branch
      %21 = sbr.rel (0) target = $region9
    $region8: #{tpu_custom_call.1} parent=1 // pred_region
      %s23 = ssub.s32 256, 256
      %24 = vsyncadd [#allocation7], %s23
      %s25 = sshll.u32 [#allocation6], 4
      %s26 = int_to_ptr.vmem [resolvable:$true] %s25
      %31 = dma.hbm_to_vmem [thread:$0]  %s1, 256, %s26, [#allocation7], 128, 128, 8
    $region9: #{tpu_custom_call.1} parent=1 // pred_fallthru
      _
    // Predicated region
    $region10: #{tpu_custom_call.1} parent=1 // pred_check
      _
    $region11: #{tpu_custom_call.1} parent=1 // pred_check_branch
      %33 = sbr.rel (0) target = $region13
    $region12: #{tpu_custom_call.1} parent=1 // pred_region
      %34 = dma.done [#allocation4], 16
    $region13: #{tpu_custom_call.1} parent=1 // pred_fallthru
      _
    // Predicated region
    $region14: #{tpu_custom_call.1} parent=1 // pred_check
      _
    $region15: #{tpu_custom_call.1} parent=1 // pred_check_branch
      %36 = sbr.rel (0) target = $region17
    $region16: #{tpu_custom_call.1} parent=1 // pred_region
      %37 = dma.done [#allocation7], 256
    $region17: #{tpu_custom_call.1} parent=1 // pred_fallthru
      _
    %p38 = scmp.eq.s32.totalorder 0, 0
    // Predicated region
    $region18: #{tpu_custom_call.1} parent=1 // pred_check
      %p39 = pneg %p38
    $region19: #{tpu_custom_call.1} parent=1 // pred_check_branch
      %41 = sbr.rel (%p39) target = $region21
    $region20: #{tpu_custom_call.1} parent=1 // pred_region
      %vm42 = vcmask 258048
      %43 = vst.msk [vmem:[#allocation2] sm:$0x1f] %vm42, 0.0
    $region21: #{tpu_custom_call.1} parent=1 // pred_fallthru
      _
    %v44 = vld [vmem:[#allocation3] sm:$0x1]
    %v45 = vlaneseq
    %v46 = vshrl.u32 %v45, 7
    %s47 = smul.u32 0, 5
    %v48 = vstv %s47
    %v49 = vadd.s32 %v46, %v48
    %v50 = vlaneseq
    %v51 = vshrl.u32 %v50, 7
    %v52 = vsub.s32 0, %v51
    %v53 = vrot.slane %v44, %v52
    %vm54 = vcmp.eq.s32.totalorder %v49, %v53
    %v55 = vsel %vm54, 1, 0
    %v56 = vcvt.s32.f32 %v55
    %p57 = scmp.lt.s32.totalorder 0, 0
    // Predicated region
    $region22: #{tpu_custom_call.1} parent=1 // pred_check
      %p58 = pneg %p57
    $region23: #{tpu_custom_call.1} parent=1 // pred_check_branch
      %60 = sbr.rel (%p58) target = $region25
    $region24: #{tpu_custom_call.1} parent=1 // pred_region
      %v61 = vld [vmem:[#allocation6] sm:$0xff]
      %v62 = vld [vmem:[#allocation6 + $0x8] sm:$0xff]
      %v63 = vld [vmem:[#allocation2] sm:$0x1f]
      %vm64 = vcmask 130048
      %v66 = vsel %vm64, %v56, 0
      %68 = vmatprep.subr.mxu0 0.0
      %69 = vmatpush1.msra.mxu0 %v61
      %70 = vmatprep.subr.mxu0 0.0
      %71 = vmatpush1.msra.mxu0 %v62
      %72 = vmatprep.subr.mxu0 0.0
      %73 = vmatpush1.msra.mxu0 0.0
      %74 = vmatprep.subr.mxu0 0.0
      %75 = vmatpush1.msra.mxu0 0.0
      %76 = vmatprep.subr.mxu0 0.0
      %77 = vmatpush1.msra.mxu0 0.0
      %78 = vmatprep.subr.mxu0 0.0
      %79 = vmatpush1.msra.mxu0 0.0
      %80 = vmatprep.subr.mxu0 0.0
      %81 = vmatpush1.msra.mxu0 0.0
      %82 = vmatprep.subr.mxu0 0.0
      %83 = vmatpush1.msra.mxu0 0.0
      %84 = vmatprep.subr.mxu0 0.0
      %85 = vmatpush1.msra.mxu0 0.0
      %86 = vmatprep.subr.mxu0 0.0
      %87 = vmatpush1.msra.mxu0 0.0
      %88 = vmatprep.subr.mxu0 0.0
      %89 = vmatpush1.msra.mxu0 0.0
      %90 = vmatprep.subr.mxu0 0.0
      %91 = vmatpush1.msra.mxu0 0.0
      %92 = vmatprep.subr.mxu0 0.0
      %93 = vmatpush1.msra.mxu0 0.0
      %94 = vmatprep.subr.mxu0 0.0
      %95 = vmatpush1.msra.mxu0 0.0
      %96 = vmatprep.subr.mxu0 0.0
      %97 = vmatpush1.msra.mxu0 0.0
      %98 = vmatprep.subr.mxu0 0.0
      %99 = vmatpush1.msra.mxu0 0.0
      %100 = vmatprep.subr.mxu0 0.0
      %101 = vmatpush1.msra.mxu0 0.0
      %102 = vmatprep.subr.mxu0 0.0
      %103 = vmatpush1.msra.mxu0 0.0
      %104 = vmatprep.subr.mxu0 0.0
      %105 = vmatpush1.msra.mxu0 0.0
      %106 = vmatprep.subr.mxu0 0.0
      %107 = vmatpush1.msra.mxu0 0.0
      %108 = vmatprep.subr.mxu0 0.0
      %109 = vmatpush1.msra.mxu0 0.0
      %110 = vmatprep.subr.mxu0 0.0
      %111 = vmatpush1.msra.mxu0 0.0
      %112 = vmatprep.subr.mxu0 0.0
      %113 = vmatpush1.msra.mxu0 0.0
      %114 = vmatprep.subr.mxu0 0.0
      %115 = vmatpush1.msra.mxu0 0.0
      %116 = vmatprep.subr.mxu0 0.0
      %117 = vmatpush1.msra.mxu0 0.0
      %118 = vmatprep.subr.mxu0 0.0
      %119 = vmatpush1.msra.mxu0 0.0
      %120 = vmatprep.subr.mxu0 0.0
      %121 = vmatpush1.msra.mxu0 0.0
      %122 = vmatprep.subr.mxu0 0.0
      %123 = vmatpush1.msra.mxu0 0.0
      %124 = vmatprep.subr.mxu0 0.0
      %125 = vmatpush1.msra.mxu0 0.0
      %126 = vmatprep.subr.mxu0 0.0
      %127 = vmatpush1.msra.mxu0 0.0
      %128 = vmatprep.subr.mxu0 0.0
      %129 = vmatpush1.msra.mxu0 0.0
      %130 = vmatprep.subr.mxu0 0.0
      %131 = vmatpush1.msra.mxu0 0.0
      %132 = vmatprep.mubr.f32.mxu0 0.0
      %133 = vmatmul.mubr.f32.gmra.mrb[0].mxu0 %v66
      %v134 = vpop.f32.mrb[0].mxu0
      %v135 = vadd.f32 0.0, %v134
      %v136 = vpop.f32.mrb[0].mxu0
      %137 = vdwg.mxu0
      %v138 = vadd.f32 %v63, %v135
      %vm139 = vcmask 258048
      %140 = vst.msk [vmem:[#allocation2] sm:$0x1f] %vm139, %v138
    $region25: #{tpu_custom_call.1} parent=1 // pred_fallthru
      _
    // Predicated region
    $region26: #{tpu_custom_call.1} parent=1 // pred_check
      %p141 = pneg %p38
    $region27: #{tpu_custom_call.1} parent=1 // pred_check_branch
      %143 = sbr.rel (%p141) target = $region29
    $region28: #{tpu_custom_call.1} parent=1 // pred_region
      %v144 = vld [vmem:[#allocation6] sm:$0xff]
      %v145 = vld [vmem:[#allocation6 + $0x8] sm:$0xff]
      %v146 = vadd.s32 %v46, 8
      %s147 = smul.u32 0, 16
      %v148 = vstv %s147
      %v149 = vadd.s32 %v46, %v148
      %v150 = vadd.s32 %v146, %v148
      %vm151 = vcmp.lt.s32.totalorder %v149, 10
      %vm152 = vcmp.lt.s32.totalorder %v150, 10
      %v153 = vsel %vm151, 1, 0
      %v154 = vsel %vm152, 1, 0
      %vm155 = vcmp.eq.s32.totalorder %v153, 1
      %vm156 = vcmp.eq.s32.totalorder %v154, 1
      %v157 = vsel %vm155, %v144, 0.0
      %v158 = vsel %vm156, %v145, 0.0
      %v159 = vld [vmem:[#allocation2] sm:$0x1f]
      %vm160 = vcmask 130048
      %v162 = vsel %vm160, %v56, 0
      %164 = vmatprep.subr.mxu0 0.0
      %165 = vmatpush1.msra.mxu0 %v157
      %166 = vmatprep.subr.mxu0 0.0
      %167 = vmatpush1.msra.mxu0 %v158
      %168 = vmatprep.subr.mxu0 0.0
      %169 = vmatpush1.msra.mxu0 0.0
      %170 = vmatprep.subr.mxu0 0.0
      %171 = vmatpush1.msra.mxu0 0.0
      %172 = vmatprep.subr.mxu0 0.0
      %173 = vmatpush1.msra.mxu0 0.0
      %174 = vmatprep.subr.mxu0 0.0
      %175 = vmatpush1.msra.mxu0 0.0
      %176 = vmatprep.subr.mxu0 0.0
      %177 = vmatpush1.msra.mxu0 0.0
      %178 = vmatprep.subr.mxu0 0.0
      %179 = vmatpush1.msra.mxu0 0.0
      %180 = vmatprep.subr.mxu0 0.0
      %181 = vmatpush1.msra.mxu0 0.0
      %182 = vmatprep.subr.mxu0 0.0
      %183 = vmatpush1.msra.mxu0 0.0
      %184 = vmatprep.subr.mxu0 0.0
      %185 = vmatpush1.msra.mxu0 0.0
      %186 = vmatprep.subr.mxu0 0.0
      %187 = vmatpush1.msra.mxu0 0.0
      %188 = vmatprep.subr.mxu0 0.0
      %189 = vmatpush1.msra.mxu0 0.0
      %190 = vmatprep.subr.mxu0 0.0
      %191 = vmatpush1.msra.mxu0 0.0
      %192 = vmatprep.subr.mxu0 0.0
      %193 = vmatpush1.msra.mxu0 0.0
      %194 = vmatprep.subr.mxu0 0.0
      %195 = vmatpush1.msra.mxu0 0.0
      %196 = vmatprep.subr.mxu0 0.0
      %197 = vmatpush1.msra.mxu0 0.0
      %198 = vmatprep.subr.mxu0 0.0
      %199 = vmatpush1.msra.mxu0 0.0
      %200 = vmatprep.subr.mxu0 0.0
      %201 = vmatpush1.msra.mxu0 0.0
      %202 = vmatprep.subr.mxu0 0.0
      %203 = vmatpush1.msra.mxu0 0.0
      %204 = vmatprep.subr.mxu0 0.0
      %205 = vmatpush1.msra.mxu0 0.0
      %206 = vmatprep.subr.mxu0 0.0
      %207 = vmatpush1.msra.mxu0 0.0
      %208 = vmatprep.subr.mxu0 0.0
      %209 = vmatpush1.msra.mxu0 0.0
      %210 = vmatprep.subr.mxu0 0.0
      %211 = vmatpush1.msra.mxu0 0.0
      %212 = vmatprep.subr.mxu0 0.0
      %213 = vmatpush1.msra.mxu0 0.0
      %214 = vmatprep.subr.mxu0 0.0
      %215 = vmatpush1.msra.mxu0 0.0
      %216 = vmatprep.subr.mxu0 0.0
      %217 = vmatpush1.msra.mxu0 0.0
      %218 = vmatprep.subr.mxu0 0.0
      %219 = vmatpush1.msra.mxu0 0.0
      %220 = vmatprep.subr.mxu0 0.0
      %221 = vmatpush1.msra.mxu0 0.0
      %222 = vmatprep.subr.mxu0 0.0
      %223 = vmatpush1.msra.mxu0 0.0
      %224 = vmatprep.subr.mxu0 0.0
      %225 = vmatpush1.msra.mxu0 0.0
      %226 = vmatprep.subr.mxu0 0.0
      %227 = vmatpush1.msra.mxu0 0.0
      %228 = vmatprep.mubr.f32.mxu0 0.0
      %229 = vmatmul.mubr.f32.gmra.mrb[0].mxu0 %v162
      %v230 = vpop.f32.mrb[0].mxu0
      %v231 = vadd.f32 0.0, %v230
      %v232 = vpop.f32.mrb[0].mxu0
      %233 = vdwg.mxu0
      %v234 = vadd.f32 %v159, %v231
      %vm235 = vcmask 258048
      %236 = vst.msk [vmem:[#allocation2] sm:$0x1f] %vm235, %v234
      %v237 = vld [vmem:[#allocation2] sm:$0x1f]
      %238 = vst.msk [vmem:[#allocation8] sm:$0x1f] %vm235, %v237
    $region29: #{tpu_custom_call.1} parent=1 // pred_fallthru
      _
    // Predicated region
    $region30: #{tpu_custom_call.1} parent=1 // pred_check
      _
    $region31: #{tpu_custom_call.1} parent=1 // pred_check_branch
      %240 = sbr.rel (0) target = $region33
    $region32: #{tpu_custom_call.1} parent=1 // pred_region
      %s242 = ssub.s32 128, 128
      %243 = vsyncadd [#allocation5], %s242
      %s245 = sshll.u32 [#allocation8], 4
      %s246 = int_to_ptr.vmem [resolvable:$true] %s245
      %248 = dma.vmem_to_hbm [thread:$0]  %s246, 128, %s2, [#allocation5]
    $region33: #{tpu_custom_call.1} parent=1 // pred_fallthru
      _
    // Predicated region
    $region34: #{tpu_custom_call.1} parent=1 // pred_check
      _
    $region35: #{tpu_custom_call.1} parent=1 // pred_check_branch
      %250 = sbr.rel (0) target = $region37
    $region36: #{tpu_custom_call.1} parent=1 // pred_region
      %251 = dma.done [#allocation5], 128
    $region37: #{tpu_custom_call.1} parent=1 // pred_fallthru
      _
    %252 = vsyncpa [#allocation4], 1
    %253 = vsyncpa [#allocation7], 1
    %254 = vsyncpa [#allocation5], 1

</llo_original>
